<compile_context>
chip_gen: v7x
topology: tpu7x:2x2x1
jax: 0.10.0
libtpu: 0.0.40
codegen_flags: <defaults>
</compile_context>

<pallas_src>
import functools

import jax
import jax.numpy as jnp
from jax.experimental import pallas as pl
from jax.experimental.pallas import tpu as pltpu


def _vmem():
    return pl.BlockSpec(memory_space=pltpu.MemorySpace.VMEM)


def _round_up(n, m=128):
    return ((n + m - 1) // m) * m


def _pad_cols(a, to):
    p = to - a.shape[1]
    return a if p == 0 else jnp.pad(a, ((0, 0), (0, p)))


def _pad_rows(a, to):
    p = to - a.shape[0]
    return a if p == 0 else jnp.pad(a, ((0, p), (0, 0)))


# ----------------------------- fused Pallas kernel ---------------------------

def simclr_fused_kernel(x_ref, wbb_ref, bbb_ref, w1_ref, b1_ref, g_ref,
                        beta_ref, w2_ref, b2_ref, o_ref, *,
                        batch_size, inv_temp):
    f32 = jnp.float32
    B = batch_size
    n2 = 2 * B

    # ---- backbone stand-in: Linear over flattened pixels + ReLU ----
    # TODO(synk): loadResnetBackbone (full ResNet) is external to the module;
    # a single Linear+ReLU producing outfeatx features stands in for it.
    x = x_ref[...]
    h = jnp.dot(x, wbb_ref[...], preferred_element_type=f32) + bbb_ref[...]
    h = jnp.maximum(h, 0.0)

    # ---- projector: Linear -> BatchNorm1d (per-view stats) -> ReLU -> Linear
    p = jnp.dot(h, w1_ref[...], preferred_element_type=f32) + b1_ref[...]

    row = jax.lax.broadcasted_iota(jnp.int32, (n2, 1), 0)
    m1 = (row < B).astype(f32)          # rows of view 1
    m2 = 1.0 - m1                       # rows of view 2
    inv_b = 1.0 / B
    mean1 = jnp.sum(p * m1, axis=0, keepdims=True) * inv_b
    mean2 = jnp.sum(p * m2, axis=0, keepdims=True) * inv_b
    mean_b = m1 * mean1 + m2 * mean2
    d = p - mean_b
    var1 = jnp.sum(d * d * m1, axis=0, keepdims=True) * inv_b
    var2 = jnp.sum(d * d * m2, axis=0, keepdims=True) * inv_b
    var_b = m1 * var1 + m2 * var2
    p = d * jax.lax.rsqrt(var_b + 1e-5) * g_ref[...] + beta_ref[...]
    p = jnp.maximum(p, 0.0)

    z = jnp.dot(p, w2_ref[...], preferred_element_type=f32) + b2_ref[...]

    # ---- InfoNCE / ContrastiveLoss over concat([z1, z2]) = z (rows 0..2B-1)
    sumsq = jnp.sum(z * z, axis=1, keepdims=True)
    rn = z * jax.lax.rsqrt(jnp.maximum(sumsq, 1e-16))       # unit rows
    # cosine-similarity matrix without materializing rn.T
    sim = jax.lax.dot_general(rn, rn, (((1,), (1,)), ((), ())),
                              preferred_element_type=f32)   # [2B, 2B]
    scaled = sim * inv_temp

    ri = jax.lax.broadcasted_iota(jnp.int32, (n2, n2), 0)
    ci = jax.lax.broadcasted_iota(jnp.int32, (n2, n2), 1)
    off_diag = ri != ci
    pos = jnp.logical_or(ci - ri == B, ri - ci == B)

    positives = jnp.sum(jnp.where(pos, scaled, 0.0), axis=1, keepdims=True)
    masked = jnp.where(off_diag, scaled, -1e30)
    mrow = jnp.max(masked, axis=1, keepdims=True)            # row max (stable)
    denom = jnp.sum(jnp.exp(masked - mrow), axis=1, keepdims=True)
    losses = (mrow + jnp.log(denom)) - positives             # [2B, 1]
    total = jnp.sum(losses, axis=0, keepdims=True)           # [1, 1]
    o_ref[...] = total * (1.0 / n2)


# ---------------------------------- wrapper ----------------------------------

@functools.partial(jax.jit, static_argnames=("temp",))
def simclr_forward(y1, y2, params, temp):
    """y1, y2: NCHW float32 inputs. Returns the scalar contrastive loss."""
    B, C, H, W = y1.shape
    chw = C * H * W
    chw_p = _round_up(chw)
    f_p = _round_up(params["w_bb"].shape[1])   # backbone feature dim
    m_p = _round_up(params["w1"].shape[1])     # projector mlp dim
    e_p = _round_up(params["w2"].shape[1])     # embedding dim

    # both views stacked -> one matmul chain, weights DMA'd once
    x = jnp.concatenate([y1.reshape(B, chw), y2.reshape(B, chw)],
                        axis=0).astype(jnp.float32)
    x = _pad_cols(x, chw_p)

    # zero-pad all feature dims to 128-lane multiples (transparent, see header)
    wbb = _pad_cols(_pad_rows(params["w_bb"], chw_p), f_p)
    bbb = _pad_cols(params["b_bb"], f_p)
    w1 = _pad_cols(_pad_rows(params["w1"], f_p), m_p)
    b1 = _pad_cols(params["b1"], m_p)
    g = _pad_cols(params["gamma"], m_p)
    beta = _pad_cols(params["beta"], m_p)
    w2 = _pad_cols(_pad_rows(params["w2"], m_p), e_p)
    b2 = _pad_cols(params["b2"], e_p)

    fused = pl.pallas_call(
        functools.partial(simclr_fused_kernel,
                          batch_size=B, inv_temp=1.0 / temp),
        out_shape=jax.ShapeDtypeStruct((1, 1), jnp.float32),
        in_specs=[_vmem()] * 9,
        out_specs=_vmem(),
        compiler_params=pltpu.CompilerParams(vmem_limit_bytes=32 * 1024 * 1024),
    )
    loss = fused(x, wbb, bbb, w1, b1, g, beta, w2, b2)
    return loss[0, 0]


def init_params(key, chw, outfeatx, mlp_dim, emb):
    k1, k2, k3 = jax.random.split(key, 3)
    return {
        "w_bb": jax.random.normal(k1, (chw, outfeatx), jnp.float32)
                * (1.0 / jnp.sqrt(chw)),
        "b_bb": jnp.zeros((1, outfeatx), jnp.float32),
        "w1": jax.random.normal(k2, (outfeatx, mlp_dim), jnp.float32)
              * (1.0 / jnp.sqrt(outfeatx)),
        "b1": jnp.zeros((1, mlp_dim), jnp.float32),
        "gamma": jnp.ones((1, mlp_dim), jnp.float32),   # BatchNorm1d weight
        "beta": jnp.zeros((1, mlp_dim), jnp.float32),   # BatchNorm1d bias
        "w2": jax.random.normal(k3, (mlp_dim, emb), jnp.float32)
              * (1.0 / jnp.sqrt(mlp_dim)),
        "b2": jnp.zeros((1, emb), jnp.float32),
    }


if __name__ == "__main__":
    # small shapes: batch=2, channels=4, spatial=16x16
    B, C, H, W = 2, 4, 16, 16
    outfeatx_size = 32          # backbone output feature size
    projector_sizes = (32, 16)  # (mlp_dim, embedding_size)
    temperature = 0.5

    key = jax.random.PRNGKey(0)
    k_y1, k_y2, k_p = jax.random.split(key, 3)
    y1 = jax.random.normal(k_y1, (B, C, H, W), jnp.float32)
    y2 = jax.random.normal(k_y2, (B, C, H, W), jnp.float32)

    params = init_params(k_p, C * H * W, outfeatx_size,
                         projector_sizes[0], projector_sizes[1])

    loss = simclr_forward(y1, y2, params, temperature)
    jax.block_until_ready(loss)
    assert loss.shape == () and jnp.isfinite(loss)
    print("KERNEL_OK")
</pallas_src>

<mosaic_0001>
module attributes {stable_mosaic.version = 11 : i64} {
  func.func @simclr_fused_kernel(%arg0: memref<4x1024xf32, #tpu.memory_space<vmem>>, %arg1: memref<1024x128xf32, #tpu.memory_space<vmem>>, %arg2: memref<1x128xf32, #tpu.memory_space<vmem>>, %arg3: memref<128x128xf32, #tpu.memory_space<vmem>>, %arg4: memref<1x128xf32, #tpu.memory_space<vmem>>, %arg5: memref<1x128xf32, #tpu.memory_space<vmem>>, %arg6: memref<1x128xf32, #tpu.memory_space<vmem>>, %arg7: memref<128x128xf32, #tpu.memory_space<vmem>>, %arg8: memref<1x128xf32, #tpu.memory_space<vmem>>, %arg9: memref<1x1xf32, #tpu.memory_space<vmem>>) attributes {dimension_semantics = [], scalar_prefetch = 0 : i64, scratch_operands = 0 : i64, tpu.core_type = #tpu.core_type<tc>} {
    %c0 = arith.constant 0 : index
    %c0_0 = arith.constant 0 : index
    %0 = vector.load %arg0[%c0, %c0_0] : memref<4x1024xf32, #tpu.memory_space<vmem>>, vector<4x1024xf32>
    %c0_1 = arith.constant 0 : index
    %c0_2 = arith.constant 0 : index
    %1 = vector.load %arg1[%c0_1, %c0_2] : memref<1024x128xf32, #tpu.memory_space<vmem>>, vector<1024x128xf32>
    %cst = arith.constant dense<0.000000e+00> : vector<4x128xf32>
    %2 = tpu.matmul %0, %1, %cst {dimension_numbers = #tpu.dot_dimension_numbers<[1], [0], [0], [1], [0, 0, 1, 1], [], []>} : vector<4x1024xf32>, vector<1024x128xf32>, vector<4x128xf32> -> vector<4x128xf32>
    %c0_3 = arith.constant 0 : index
    %c0_4 = arith.constant 0 : index
    %3 = vector.load %arg2[%c0_3, %c0_4] : memref<1x128xf32, #tpu.memory_space<vmem>>, vector<1x128xf32>
    %4 = vector.broadcast %3 : vector<1x128xf32> to vector<4x128xf32>
    %5 = arith.addf %2, %4 : vector<4x128xf32>
    %cst_5 = arith.constant 0.000000e+00 : f32
    %6 = vector.broadcast %cst_5 : f32 to vector<4x128xf32>
    %7 = arith.maximumf %5, %6 : vector<4x128xf32>
    %c0_6 = arith.constant 0 : index
    %c0_7 = arith.constant 0 : index
    %8 = vector.load %arg3[%c0_6, %c0_7] : memref<128x128xf32, #tpu.memory_space<vmem>>, vector<128x128xf32>
    %cst_8 = arith.constant dense<0.000000e+00> : vector<4x128xf32>
    %9 = tpu.matmul %7, %8, %cst_8 {dimension_numbers = #tpu.dot_dimension_numbers<[1], [0], [0], [1], [0, 0, 1, 1], [], []>} : vector<4x128xf32>, vector<128x128xf32>, vector<4x128xf32> -> vector<4x128xf32>
    %c0_9 = arith.constant 0 : index
    %c0_10 = arith.constant 0 : index
    %10 = vector.load %arg4[%c0_9, %c0_10] : memref<1x128xf32, #tpu.memory_space<vmem>>, vector<1x128xf32>
    %11 = vector.broadcast %10 : vector<1x128xf32> to vector<4x128xf32>
    %12 = arith.addf %9, %11 : vector<4x128xf32>
    %13 = tpu.iota {dimensions = array<i32: 0>} : vector<4x1xi32>
    %c2_i32 = arith.constant 2 : i32
    %14 = vector.broadcast %c2_i32 : i32 to vector<4x1xi32>
    %15 = arith.cmpi slt, %13, %14 : vector<4x1xi32>
    %16 = arith.extui %15 : vector<4x1xi1> to vector<4x1xi32>
    %17 = arith.sitofp %16 : vector<4x1xi32> to vector<4x1xf32>
    %cst_11 = arith.constant 1.000000e+00 : f32
    %18 = vector.broadcast %cst_11 : f32 to vector<4x1xf32>
    %19 = arith.subf %18, %17 : vector<4x1xf32>
    %20 = vector.broadcast %17 : vector<4x1xf32> to vector<4x128xf32>
    %21 = arith.mulf %12, %20 : vector<4x128xf32>
    %cst_12 = arith.constant dense<0.000000e+00> : vector<128xf32>
    %22 = vector.multi_reduction <add>, %21, %cst_12 [0] : vector<4x128xf32> to vector<128xf32>
    %23 = vector.shape_cast %22 : vector<128xf32> to vector<1x128xf32>
    %cst_13 = arith.constant 5.000000e-01 : f32
    %24 = vector.broadcast %cst_13 : f32 to vector<1x128xf32>
    %25 = arith.mulf %23, %24 : vector<1x128xf32>
    %26 = vector.broadcast %19 : vector<4x1xf32> to vector<4x128xf32>
    %27 = arith.mulf %12, %26 : vector<4x128xf32>
    %cst_14 = arith.constant dense<0.000000e+00> : vector<128xf32>
    %28 = vector.multi_reduction <add>, %27, %cst_14 [0] : vector<4x128xf32> to vector<128xf32>
    %29 = vector.shape_cast %28 : vector<128xf32> to vector<1x128xf32>
    %cst_15 = arith.constant 5.000000e-01 : f32
    %30 = vector.broadcast %cst_15 : f32 to vector<1x128xf32>
    %31 = arith.mulf %29, %30 : vector<1x128xf32>
    %32 = vector.broadcast %17 : vector<4x1xf32> to vector<4x128xf32>
    %33 = vector.broadcast %25 : vector<1x128xf32> to vector<4x128xf32>
    %34 = arith.mulf %32, %33 : vector<4x128xf32>
    %35 = vector.broadcast %19 : vector<4x1xf32> to vector<4x128xf32>
    %36 = vector.broadcast %31 : vector<1x128xf32> to vector<4x128xf32>
    %37 = arith.mulf %35, %36 : vector<4x128xf32>
    %38 = arith.addf %34, %37 : vector<4x128xf32>
    %39 = arith.subf %12, %38 : vector<4x128xf32>
    %40 = arith.mulf %39, %39 : vector<4x128xf32>
    %41 = vector.broadcast %17 : vector<4x1xf32> to vector<4x128xf32>
    %42 = arith.mulf %40, %41 : vector<4x128xf32>
    %cst_16 = arith.constant dense<0.000000e+00> : vector<128xf32>
    %43 = vector.multi_reduction <add>, %42, %cst_16 [0] : vector<4x128xf32> to vector<128xf32>
    %44 = vector.shape_cast %43 : vector<128xf32> to vector<1x128xf32>
    %cst_17 = arith.constant 5.000000e-01 : f32
    %45 = vector.broadcast %cst_17 : f32 to vector<1x128xf32>
    %46 = arith.mulf %44, %45 : vector<1x128xf32>
    %47 = arith.mulf %39, %39 : vector<4x128xf32>
    %48 = vector.broadcast %19 : vector<4x1xf32> to vector<4x128xf32>
    %49 = arith.mulf %47, %48 : vector<4x128xf32>
    %cst_18 = arith.constant dense<0.000000e+00> : vector<128xf32>
    %50 = vector.multi_reduction <add>, %49, %cst_18 [0] : vector<4x128xf32> to vector<128xf32>
    %51 = vector.shape_cast %50 : vector<128xf32> to vector<1x128xf32>
    %cst_19 = arith.constant 5.000000e-01 : f32
    %52 = vector.broadcast %cst_19 : f32 to vector<1x128xf32>
    %53 = arith.mulf %51, %52 : vector<1x128xf32>
    %54 = vector.broadcast %17 : vector<4x1xf32> to vector<4x128xf32>
    %55 = vector.broadcast %46 : vector<1x128xf32> to vector<4x128xf32>
    %56 = arith.mulf %54, %55 : vector<4x128xf32>
    %57 = vector.broadcast %19 : vector<4x1xf32> to vector<4x128xf32>
    %58 = vector.broadcast %53 : vector<1x128xf32> to vector<4x128xf32>
    %59 = arith.mulf %57, %58 : vector<4x128xf32>
    %60 = arith.addf %56, %59 : vector<4x128xf32>
    %cst_20 = arith.constant 9.99999974E-6 : f32
    %61 = vector.broadcast %cst_20 : f32 to vector<4x128xf32>
    %62 = arith.addf %60, %61 : vector<4x128xf32>
    %63 = math.rsqrt %62 : vector<4x128xf32>
    %64 = arith.mulf %39, %63 : vector<4x128xf32>
    %c0_21 = arith.constant 0 : index
    %c0_22 = arith.constant 0 : index
    %65 = vector.load %arg5[%c0_21, %c0_22] : memref<1x128xf32, #tpu.memory_space<vmem>>, vector<1x128xf32>
    %66 = vector.broadcast %65 : vector<1x128xf32> to vector<4x128xf32>
    %67 = arith.mulf %64, %66 : vector<4x128xf32>
    %c0_23 = arith.constant 0 : index
    %c0_24 = arith.constant 0 : index
    %68 = vector.load %arg6[%c0_23, %c0_24] : memref<1x128xf32, #tpu.memory_space<vmem>>, vector<1x128xf32>
    %69 = vector.broadcast %68 : vector<1x128xf32> to vector<4x128xf32>
    %70 = arith.addf %67, %69 : vector<4x128xf32>
    %cst_25 = arith.constant 0.000000e+00 : f32
    %71 = vector.broadcast %cst_25 : f32 to vector<4x128xf32>
    %72 = arith.maximumf %70, %71 : vector<4x128xf32>
    %c0_26 = arith.constant 0 : index
    %c0_27 = arith.constant 0 : index
    %73 = vector.load %arg7[%c0_26, %c0_27] : memref<128x128xf32, #tpu.memory_space<vmem>>, vector<128x128xf32>
    %cst_28 = arith.constant dense<0.000000e+00> : vector<4x128xf32>
    %74 = tpu.matmul %72, %73, %cst_28 {dimension_numbers = #tpu.dot_dimension_numbers<[1], [0], [0], [1], [0, 0, 1, 1], [], []>} : vector<4x128xf32>, vector<128x128xf32>, vector<4x128xf32> -> vector<4x128xf32>
    %c0_29 = arith.constant 0 : index
    %c0_30 = arith.constant 0 : index
    %75 = vector.load %arg8[%c0_29, %c0_30] : memref<1x128xf32, #tpu.memory_space<vmem>>, vector<1x128xf32>
    %76 = vector.broadcast %75 : vector<1x128xf32> to vector<4x128xf32>
    %77 = arith.addf %74, %76 : vector<4x128xf32>
    %78 = arith.mulf %77, %77 : vector<4x128xf32>
    %cst_31 = arith.constant dense<0.000000e+00> : vector<4xf32>
    %79 = vector.multi_reduction <add>, %78, %cst_31 [1] : vector<4x128xf32> to vector<4xf32>
    %80 = vector.shape_cast %79 : vector<4xf32> to vector<4x1xf32>
    %cst_32 = arith.constant 1.000000e-16 : f32
    %81 = vector.broadcast %cst_32 : f32 to vector<4x1xf32>
    %82 = arith.maximumf %80, %81 : vector<4x1xf32>
    %83 = math.rsqrt %82 : vector<4x1xf32>
    %84 = vector.broadcast %83 : vector<4x1xf32> to vector<4x128xf32>
    %85 = arith.mulf %77, %84 : vector<4x128xf32>
    %cst_33 = arith.constant dense<0.000000e+00> : vector<4x4xf32>
    %86 = tpu.matmul %85, %85, %cst_33 {dimension_numbers = #tpu.dot_dimension_numbers<[1], [1], [0], [0], [0, 0, 1, 0], [], []>} : vector<4x128xf32>, vector<4x128xf32>, vector<4x4xf32> -> vector<4x4xf32>
    %cst_34 = arith.constant 2.000000e+00 : f32
    %87 = vector.broadcast %cst_34 : f32 to vector<4x4xf32>
    %88 = arith.mulf %86, %87 : vector<4x4xf32>
    %89 = tpu.iota {dimensions = array<i32: 0>} : vector<4x4xi32>
    %90 = tpu.iota {dimensions = array<i32: 1>} : vector<4x4xi32>
    %91 = arith.cmpi ne, %89, %90 : vector<4x4xi32>
    %92 = arith.subi %90, %89 : vector<4x4xi32>
    %c2_i32_35 = arith.constant 2 : i32
    %93 = vector.broadcast %c2_i32_35 : i32 to vector<4x4xi32>
    %94 = arith.cmpi eq, %92, %93 : vector<4x4xi32>
    %95 = arith.subi %89, %90 : vector<4x4xi32>
    %c2_i32_36 = arith.constant 2 : i32
    %96 = vector.broadcast %c2_i32_36 : i32 to vector<4x4xi32>
    %97 = arith.cmpi eq, %95, %96 : vector<4x4xi32>
    %98 = arith.ori %94, %97 : vector<4x4xi1>
    %cst_37 = arith.constant 0.000000e+00 : f32
    %99 = vector.broadcast %cst_37 : f32 to vector<4x4xf32>
    %100 = arith.select %98, %88, %99 : vector<4x4xi1>, vector<4x4xf32>
    %cst_38 = arith.constant dense<0.000000e+00> : vector<4xf32>
    %101 = vector.multi_reduction <add>, %100, %cst_38 [1] : vector<4x4xf32> to vector<4xf32>
    %102 = vector.shape_cast %101 : vector<4xf32> to vector<4x1xf32>
    %cst_39 = arith.constant -1.000000e+30 : f32
    %103 = vector.broadcast %cst_39 : f32 to vector<4x4xf32>
    %104 = arith.select %91, %88, %103 : vector<4x4xi1>, vector<4x4xf32>
    %cst_40 = arith.constant dense<0xFF800000> : vector<4xf32>
    %105 = vector.multi_reduction <maximumf>, %104, %cst_40 [1] : vector<4x4xf32> to vector<4xf32>
    %106 = vector.shape_cast %105 : vector<4xf32> to vector<4x1xf32>
    %107 = vector.broadcast %106 : vector<4x1xf32> to vector<4x4xf32>
    %108 = arith.subf %104, %107 : vector<4x4xf32>
    %109 = math.exp %108 : vector<4x4xf32>
    %cst_41 = arith.constant dense<0.000000e+00> : vector<4xf32>
    %110 = vector.multi_reduction <add>, %109, %cst_41 [1] : vector<4x4xf32> to vector<4xf32>
    %111 = vector.shape_cast %110 : vector<4xf32> to vector<4x1xf32>
    %112 = math.log %111 : vector<4x1xf32>
    %113 = arith.addf %106, %112 : vector<4x1xf32>
    %114 = arith.subf %113, %102 : vector<4x1xf32>
    %cst_42 = arith.constant dense<0.000000e+00> : vector<1xf32>
    %115 = vector.multi_reduction <add>, %114, %cst_42 [0] : vector<4x1xf32> to vector<1xf32>
    %116 = vector.shape_cast %115 : vector<1xf32> to vector<1x1xf32>
    %cst_43 = arith.constant 2.500000e-01 : f32
    %117 = vector.broadcast %cst_43 : f32 to vector<1x1xf32>
    %118 = arith.mulf %116, %117 : vector<1x1xf32>
    %c0_44 = arith.constant 0 : index
    %c0_45 = arith.constant 0 : index
    %119 = vector.load %arg9[%c0_44, %c0_45] : memref<1x1xf32, #tpu.memory_space<vmem>>, vector<1x1xf32>
    tpu.vector_store %arg9[%c0_44, %c0_45], %118 {strides = array<i32>} : memref<1x1xf32, #tpu.memory_space<vmem>>, vector<1x1xf32>,
    return
  }
}

</mosaic_0001>

<llo_original>
// kernel: simclr_forward.1
$region0: #{simclr_forward.1}
  #allocation0 [shape = 'u32[]', space=smem, size = 0x4, offset = 0x4, fixed_abs, tag = 'smem constant byte address 0x4 - core index']
  #allocation1 [shape = 'u32[144,128]{1,0:T(1,128)}', space=vmem, size = 0x12000, scoped, tag = 'internal scratch']
  %s0 = inlined_call_operand.vmem [shape: f32[4,1024], index: 0, kind: input, shape index: {}]
  %s1 = inlined_call_operand.vmem [shape: f32[1024,128], index: 1, kind: input, shape index: {}]
  %s2 = inlined_call_operand.vmem [shape: f32[1,128], index: 2, kind: input, shape index: {}]
  %s3 = inlined_call_operand.vmem [shape: f32[128,128], index: 3, kind: input, shape index: {}]
  %s4 = inlined_call_operand.vmem [shape: f32[1,128], index: 4, kind: input, shape index: {}]
  %s5 = inlined_call_operand.vmem [shape: f32[1,128], index: 5, kind: input, shape index: {}]
  %s6 = inlined_call_operand.vmem [shape: f32[1,128], index: 6, kind: input, shape index: {}]
  %s7 = inlined_call_operand.vmem [shape: f32[128,128], index: 7, kind: input, shape index: {}]
  %s8 = inlined_call_operand.vmem [shape: f32[1,128], index: 8, kind: input, shape index: {}]
  %s9 = inlined_call_operand.hbm [shape: f32[1,1], index: 9, kind: output, shape index: {}]
  %s10 = sld [smem:[#allocation0]]
  $region46: #{simclr_forward.1} parent=0
    _
  %s12 = ssub.s32 1, %s10
  %s13 = scalar_select 0, %s12, %s10
  $region1: #{simclr_forward.1} parent=0
    #allocation2 [shape = 'u8[512]{0}', space=vmem, size = 0x400, scoped, tag = 'output window, operand 0, single buffered']
    #allocation3 [shape = 's32[1]{0}', space=sflag, size = 0x4, scoped, tag = 'scoped memory for simclr_forward.1']
    %14 = vsyncpa [#allocation3], 0
    // Predicated region
    $region2: #{simclr_forward.1} parent=1 // pred_check
      _
    $region3: #{simclr_forward.1} parent=1 // pred_check_branch
      %16 = sbr.rel (0) target = $region5
    $region4: #{simclr_forward.1} parent=1 // pred_region
      _
    $region5: #{simclr_forward.1} parent=1 // pred_fallthru
      _
    // Predicated region
    $region6: #{simclr_forward.1} parent=1 // pred_check
      _
    $region7: #{simclr_forward.1} parent=1 // pred_check_branch
      %18 = sbr.rel (0) target = $region9
    $region8: #{simclr_forward.1} parent=1 // pred_region
      _
    $region9: #{simclr_forward.1} parent=1 // pred_fallthru
      _
    // Predicated region
    $region10: #{simclr_forward.1} parent=1 // pred_check
      _
    $region11: #{simclr_forward.1} parent=1 // pred_check_branch
      %20 = sbr.rel (0) target = $region13
    $region12: #{simclr_forward.1} parent=1 // pred_region
      _
    $region13: #{simclr_forward.1} parent=1 // pred_fallthru
      _
    // Predicated region
    $region14: #{simclr_forward.1} parent=1 // pred_check
      _
    $region15: #{simclr_forward.1} parent=1 // pred_check_branch
      %22 = sbr.rel (0) target = $region17
    $region16: #{simclr_forward.1} parent=1 // pred_region
      _
    $region17: #{simclr_forward.1} parent=1 // pred_fallthru
      _
    // Predicated region
    $region18: #{simclr_forward.1} parent=1 // pred_check
      _
    $region19: #{simclr_forward.1} parent=1 // pred_check_branch
      %24 = sbr.rel (0) target = $region21
    $region20: #{simclr_forward.1} parent=1 // pred_region
      _
    $region21: #{simclr_forward.1} parent=1 // pred_fallthru
      _
    // Predicated region
    $region22: #{simclr_forward.1} parent=1 // pred_check
      _
    $region23: #{simclr_forward.1} parent=1 // pred_check_branch
      %26 = sbr.rel (0) target = $region25
    $region24: #{simclr_forward.1} parent=1 // pred_region
      _
    $region25: #{simclr_forward.1} parent=1 // pred_fallthru
      _
    // Predicated region
    $region26: #{simclr_forward.1} parent=1 // pred_check
      _
    $region27: #{simclr_forward.1} parent=1 // pred_check_branch
      %28 = sbr.rel (0) target = $region29
    $region28: #{simclr_forward.1} parent=1 // pred_region
      _
    $region29: #{simclr_forward.1} parent=1 // pred_fallthru
      _
    // Predicated region
    $region30: #{simclr_forward.1} parent=1 // pred_check
      _
    $region31: #{simclr_forward.1} parent=1 // pred_check_branch
      %30 = sbr.rel (0) target = $region33
    $region32: #{simclr_forward.1} parent=1 // pred_region
      _
    $region33: #{simclr_forward.1} parent=1 // pred_fallthru
      _
    // Predicated region
    $region34: #{simclr_forward.1} parent=1 // pred_check
      _
    $region35: #{simclr_forward.1} parent=1 // pred_check_branch
      %32 = sbr.rel (0) target = $region37
    $region36: #{simclr_forward.1} parent=1 // pred_region
      _
    $region37: #{simclr_forward.1} parent=1 // pred_fallthru
      _
    %v33 = vld [vmem:[%s0] sm:$0xff]
    %v34 = vld [vmem:[%s0 + $0x8] sm:$0xff]
    %v35 = vld [vmem:[%s0 + $0x10] sm:$0xff]
    %v36 = vld [vmem:[%s0 + $0x18] sm:$0xff]
    %v37 = vld [vmem:[%s1] sm:$0xff]
    %v38 = vld [vmem:[%s1 + $0x8] sm:$0xff]
    %v39 = vld [vmem:[%s1 + $0x10] sm:$0xff]
    %v40 = vld [vmem:[%s1 + $0x18] sm:$0xff]
    %v41 = vld [vmem:[%s1 + $0x20] sm:$0xff]
    %v42 = vld [vmem:[%s1 + $0x28] sm:$0xff]
    %v43 = vld [vmem:[%s1 + $0x30] sm:$0xff]
    %v44 = vld [vmem:[%s1 + $0x38] sm:$0xff]
    %v45 = vld [vmem:[%s1 + $0x40] sm:$0xff]
    %v46 = vld [vmem:[%s1 + $0x48] sm:$0xff]
    %v47 = vld [vmem:[%s1 + $0x50] sm:$0xff]
    %v48 = vld [vmem:[%s1 + $0x58] sm:$0xff]
    %v49 = vld [vmem:[%s1 + $0x60] sm:$0xff]
    %v50 = vld [vmem:[%s1 + $0x68] sm:$0xff]
    %v51 = vld [vmem:[%s1 + $0x70] sm:$0xff]
    %v52 = vld [vmem:[%s1 + $0x78] sm:$0xff]
    %v53 = vld [vmem:[%s1 + $0x80] sm:$0xff]
    %v54 = vld [vmem:[%s1 + $0x88] sm:$0xff]
    %v55 = vld [vmem:[%s1 + $0x90] sm:$0xff]
    %v56 = vld [vmem:[%s1 + $0x98] sm:$0xff]
    %v57 = vld [vmem:[%s1 + $0xa0] sm:$0xff]
    %v58 = vld [vmem:[%s1 + $0xa8] sm:$0xff]
    %v59 = vld [vmem:[%s1 + $0xb0] sm:$0xff]
    %v60 = vld [vmem:[%s1 + $0xb8] sm:$0xff]
    %v61 = vld [vmem:[%s1 + $0xc0] sm:$0xff]
    %v62 = vld [vmem:[%s1 + $0xc8] sm:$0xff]
    %v63 = vld [vmem:[%s1 + $0xd0] sm:$0xff]
    %v64 = vld [vmem:[%s1 + $0xd8] sm:$0xff]
    %v65 = vld [vmem:[%s1 + $0xe0] sm:$0xff]
    %v66 = vld [vmem:[%s1 + $0xe8] sm:$0xff]
    %v67 = vld [vmem:[%s1 + $0xf0] sm:$0xff]
    %v68 = vld [vmem:[%s1 + $0xf8] sm:$0xff]
    %v69 = vld [vmem:[%s1 + $0x100] sm:$0xff]
    %v70 = vld [vmem:[%s1 + $0x108] sm:$0xff]
    %v71 = vld [vmem:[%s1 + $0x110] sm:$0xff]
    %v72 = vld [vmem:[%s1 + $0x118] sm:$0xff]
    %v73 = vld [vmem:[%s1 + $0x120] sm:$0xff]
    %v74 = vld [vmem:[%s1 + $0x128] sm:$0xff]
    %v75 = vld [vmem:[%s1 + $0x130] sm:$0xff]
    %v76 = vld [vmem:[%s1 + $0x138] sm:$0xff]
    %v77 = vld [vmem:[%s1 + $0x140] sm:$0xff]
    %v78 = vld [vmem:[%s1 + $0x148] sm:$0xff]
    %v79 = vld [vmem:[%s1 + $0x150] sm:$0xff]
    %v80 = vld [vmem:[%s1 + $0x158] sm:$0xff]
    %v81 = vld [vmem:[%s1 + $0x160] sm:$0xff]
    %v82 = vld [vmem:[%s1 + $0x168] sm:$0xff]
    %v83 = vld [vmem:[%s1 + $0x170] sm:$0xff]
    %v84 = vld [vmem:[%s1 + $0x178] sm:$0xff]
    %v85 = vld [vmem:[%s1 + $0x180] sm:$0xff]
    %v86 = vld [vmem:[%s1 + $0x188] sm:$0xff]
    %v87 = vld [vmem:[%s1 + $0x190] sm:$0xff]
    %v88 = vld [vmem:[%s1 + $0x198] sm:$0xff]
    %v89 = vld [vmem:[%s1 + $0x1a0] sm:$0xff]
    %v90 = vld [vmem:[%s1 + $0x1a8] sm:$0xff]
    %v91 = vld [vmem:[%s1 + $0x1b0] sm:$0xff]
    %v92 = vld [vmem:[%s1 + $0x1b8] sm:$0xff]
    %v93 = vld [vmem:[%s1 + $0x1c0] sm:$0xff]
    %v94 = vld [vmem:[%s1 + $0x1c8] sm:$0xff]
    %v95 = vld [vmem:[%s1 + $0x1d0] sm:$0xff]
    %v96 = vld [vmem:[%s1 + $0x1d8] sm:$0xff]
    %v97 = vld [vmem:[%s1 + $0x1e0] sm:$0xff]
    %v98 = vld [vmem:[%s1 + $0x1e8] sm:$0xff]
    %v99 = vld [vmem:[%s1 + $0x1f0] sm:$0xff]
    %v100 = vld [vmem:[%s1 + $0x1f8] sm:$0xff]
    %v101 = vld [vmem:[%s1 + $0x200] sm:$0xff]
    %v102 = vld [vmem:[%s1 + $0x208] sm:$0xff]
    %v103 = vld [vmem:[%s1 + $0x210] sm:$0xff]
    %v104 = vld [vmem:[%s1 + $0x218] sm:$0xff]
    %v105 = vld [vmem:[%s1 + $0x220] sm:$0xff]
    %v106 = vld [vmem:[%s1 + $0x228] sm:$0xff]
    %v107 = vld [vmem:[%s1 + $0x230] sm:$0xff]
    %v108 = vld [vmem:[%s1 + $0x238] sm:$0xff]
    %v109 = vld [vmem:[%s1 + $0x240] sm:$0xff]
    %v110 = vld [vmem:[%s1 + $0x248] sm:$0xff]
    %v111 = vld [vmem:[%s1 + $0x250] sm:$0xff]
    %v112 = vld [vmem:[%s1 + $0x258] sm:$0xff]
    %v113 = vld [vmem:[%s1 + $0x260] sm:$0xff]
    %v114 = vld [vmem:[%s1 + $0x268] sm:$0xff]
    %v115 = vld [vmem:[%s1 + $0x270] sm:$0xff]
    %v116 = vld [vmem:[%s1 + $0x278] sm:$0xff]
    %v117 = vld [vmem:[%s1 + $0x280] sm:$0xff]
    %v118 = vld [vmem:[%s1 + $0x288] sm:$0xff]
    %v119 = vld [vmem:[%s1 + $0x290] sm:$0xff]
    %v120 = vld [vmem:[%s1 + $0x298] sm:$0xff]
    %v121 = vld [vmem:[%s1 + $0x2a0] sm:$0xff]
    %v122 = vld [vmem:[%s1 + $0x2a8] sm:$0xff]
    %v123 = vld [vmem:[%s1 + $0x2b0] sm:$0xff]
    %v124 = vld [vmem:[%s1 + $0x2b8] sm:$0xff]
    %v125 = vld [vmem:[%s1 + $0x2c0] sm:$0xff]
    %v126 = vld [vmem:[%s1 + $0x2c8] sm:$0xff]
    %v127 = vld [vmem:[%s1 + $0x2d0] sm:$0xff]
    %v128 = vld [vmem:[%s1 + $0x2d8] sm:$0xff]
    %v129 = vld [vmem:[%s1 + $0x2e0] sm:$0xff]
    %v130 = vld [vmem:[%s1 + $0x2e8] sm:$0xff]
    %v131 = vld [vmem:[%s1 + $0x2f0] sm:$0xff]
    %v132 = vld [vmem:[%s1 + $0x2f8] sm:$0xff]
    %v133 = vld [vmem:[%s1 + $0x300] sm:$0xff]
    %v134 = vld [vmem:[%s1 + $0x308] sm:$0xff]
    %v135 = vld [vmem:[%s1 + $0x310] sm:$0xff]
    %v136 = vld [vmem:[%s1 + $0x318] sm:$0xff]
    %v137 = vld [vmem:[%s1 + $0x320] sm:$0xff]
    %v138 = vld [vmem:[%s1 + $0x328] sm:$0xff]
    %v139 = vld [vmem:[%s1 + $0x330] sm:$0xff]
    %v140 = vld [vmem:[%s1 + $0x338] sm:$0xff]
    %v141 = vld [vmem:[%s1 + $0x340] sm:$0xff]
    %v142 = vld [vmem:[%s1 + $0x348] sm:$0xff]
    %v143 = vld [vmem:[%s1 + $0x350] sm:$0xff]
    %v144 = vld [vmem:[%s1 + $0x358] sm:$0xff]
    %v145 = vld [vmem:[%s1 + $0x360] sm:$0xff]
    %v146 = vld [vmem:[%s1 + $0x368] sm:$0xff]
    %v147 = vld [vmem:[%s1 + $0x370] sm:$0xff]
    %v148 = vld [vmem:[%s1 + $0x378] sm:$0xff]
    %v149 = vld [vmem:[%s1 + $0x380] sm:$0xff]
    %v150 = vld [vmem:[%s1 + $0x388] sm:$0xff]
    %v151 = vld [vmem:[%s1 + $0x390] sm:$0xff]
    %v152 = vld [vmem:[%s1 + $0x398] sm:$0xff]
    %v153 = vld [vmem:[%s1 + $0x3a0] sm:$0xff]
    %v154 = vld [vmem:[%s1 + $0x3a8] sm:$0xff]
    %v155 = vld [vmem:[%s1 + $0x3b0] sm:$0xff]
    %v156 = vld [vmem:[%s1 + $0x3b8] sm:$0xff]
    %v157 = vld [vmem:[%s1 + $0x3c0] sm:$0xff]
    %v158 = vld [vmem:[%s1 + $0x3c8] sm:$0xff]
    %v159 = vld [vmem:[%s1 + $0x3d0] sm:$0xff]
    %v160 = vld [vmem:[%s1 + $0x3d8] sm:$0xff]
    %v161 = vld [vmem:[%s1 + $0x3e0] sm:$0xff]
    %v162 = vld [vmem:[%s1 + $0x3e8] sm:$0xff]
    %v163 = vld [vmem:[%s1 + $0x3f0] sm:$0xff]
    %v164 = vld [vmem:[%s1 + $0x3f8] sm:$0xff]
    %v165 = vld [vmem:[%s2] sm:$0x1]
    %v167 = vlaneseq
    %v168 = vshrl.u32 %v167, 7
    %v169 = vsub.s32 0, %v168
    %v170 = vrot.slane %v165, %v169
    %v176 = vcombine.high %v33, %v33
    %v177 = vcombine.high %v34, %v34
    %v178 = vcombine.high %v35, %v35
    %v179 = vcombine.high %v36, %v36
    %184 = vmatprep.subr.mxu0 0.0
    %185 = vmatpush1.msra.mxu0 %v37
    %186 = vmatprep.subr.mxu0 0.0
    %187 = vmatpush1.msra.mxu0 %v38
    %188 = vmatprep.subr.mxu0 0.0
    %189 = vmatpush1.msra.mxu0 %v39
    %190 = vmatprep.subr.mxu0 0.0
    %191 = vmatpush1.msra.mxu0 %v40
    %192 = vmatprep.subr.mxu0 0.0
    %193 = vmatpush1.msra.mxu0 %v41
    %194 = vmatprep.subr.mxu0 0.0
    %195 = vmatpush1.msra.mxu0 %v42
    %196 = vmatprep.subr.mxu0 0.0
    %197 = vmatpush1.msra.mxu0 %v43
    %198 = vmatprep.subr.mxu0 0.0
    %199 = vmatpush1.msra.mxu0 %v44
    %200 = vmatprep.subr.mxu0 0.0
    %201 = vmatpush1.msra.mxu0 %v45
    %202 = vmatprep.subr.mxu0 0.0
    %203 = vmatpush1.msra.mxu0 %v46
    %204 = vmatprep.subr.mxu0 0.0
    %205 = vmatpush1.msra.mxu0 %v47
    %206 = vmatprep.subr.mxu0 0.0
    %207 = vmatpush1.msra.mxu0 %v48
    %208 = vmatprep.subr.mxu0 0.0
    %209 = vmatpush1.msra.mxu0 %v49
    %210 = vmatprep.subr.mxu0 0.0
    %211 = vmatpush1.msra.mxu0 %v50
    %212 = vmatprep.subr.mxu0 0.0
    %213 = vmatpush1.msra.mxu0 %v51
    %214 = vmatprep.subr.mxu0 0.0
    %215 = vmatpush1.msra.mxu0 %v52
    %216 = vmatprep.subr.mxu0 0.0
    %217 = vmatpush1.msra.mxu0 %v53
    %218 = vmatprep.subr.mxu0 0.0
    %219 = vmatpush1.msra.mxu0 %v54
    %220 = vmatprep.subr.mxu0 0.0
    %221 = vmatpush1.msra.mxu0 %v55
    %222 = vmatprep.subr.mxu0 0.0
    %223 = vmatpush1.msra.mxu0 %v56
    %224 = vmatprep.subr.mxu0 0.0
    %225 = vmatpush1.msra.mxu0 %v57
    %226 = vmatprep.subr.mxu0 0.0
    %227 = vmatpush1.msra.mxu0 %v58
    %228 = vmatprep.subr.mxu0 0.0
    %229 = vmatpush1.msra.mxu0 %v59
    %230 = vmatprep.subr.mxu0 0.0
    %231 = vmatpush1.msra.mxu0 %v60
    %232 = vmatprep.subr.mxu0 0.0
    %233 = vmatpush1.msra.mxu0 %v61
    %234 = vmatprep.subr.mxu0 0.0
    %235 = vmatpush1.msra.mxu0 %v62
    %236 = vmatprep.subr.mxu0 0.0
    %237 = vmatpush1.msra.mxu0 %v63
    %238 = vmatprep.subr.mxu0 0.0
    %239 = vmatpush1.msra.mxu0 %v64
    %240 = vmatprep.subr.mxu0 0.0
    %241 = vmatpush1.msra.mxu0 %v65
    %242 = vmatprep.subr.mxu0 0.0
    %243 = vmatpush1.msra.mxu0 %v66
    %244 = vmatprep.subr.mxu0 0.0
    %245 = vmatpush1.msra.mxu0 %v67
    %246 = vmatprep.subr.mxu0 0.0
    %247 = vmatpush1.msra.mxu0 %v68
    %248 = vmatprep.mubr.f32.mxu0 %v176
    %249 = vmatmul.mubr.f32.gmra.mrb[0].mxu0 %v33
    %v250 = vpop.f32.mrb[0].mxu0
    %v251 = vadd.f32 %v170, %v250
    %v252 = vpop.f32.mrb[0].mxu0
    %253 = vdwg.mxu0
    %254 = vmatprep.subr.mxu0 0.0
    %255 = vmatpush1.msra.mxu0 %v69
    %256 = vmatprep.subr.mxu0 0.0
    %257 = vmatpush1.msra.mxu0 %v70
    %258 = vmatprep.subr.mxu0 0.0
    %259 = vmatpush1.msra.mxu0 %v71
    %260 = vmatprep.subr.mxu0 0.0
    %261 = vmatpush1.msra.mxu0 %v72
    %262 = vmatprep.subr.mxu0 0.0
    %263 = vmatpush1.msra.mxu0 %v73
    %264 = vmatprep.subr.mxu0 0.0
    %265 = vmatpush1.msra.mxu0 %v74
    %266 = vmatprep.subr.mxu0 0.0
    %267 = vmatpush1.msra.mxu0 %v75
    %268 = vmatprep.subr.mxu0 0.0
    %269 = vmatpush1.msra.mxu0 %v76
    %270 = vmatprep.subr.mxu0 0.0
    %271 = vmatpush1.msra.mxu0 %v77
    %272 = vmatprep.subr.mxu0 0.0
    %273 = vmatpush1.msra.mxu0 %v78
    %274 = vmatprep.subr.mxu0 0.0
    %275 = vmatpush1.msra.mxu0 %v79
    %276 = vmatprep.subr.mxu0 0.0
    %277 = vmatpush1.msra.mxu0 %v80
    %278 = vmatprep.subr.mxu0 0.0
    %279 = vmatpush1.msra.mxu0 %v81
    %280 = vmatprep.subr.mxu0 0.0
    %281 = vmatpush1.msra.mxu0 %v82
    %282 = vmatprep.subr.mxu0 0.0
    %283 = vmatpush1.msra.mxu0 %v83
    %284 = vmatprep.subr.mxu0 0.0
    %285 = vmatpush1.msra.mxu0 %v84
    %286 = vmatprep.subr.mxu0 0.0
    %287 = vmatpush1.msra.mxu0 %v85
    %288 = vmatprep.subr.mxu0 0.0
    %289 = vmatpush1.msra.mxu0 %v86
    %290 = vmatprep.subr.mxu0 0.0
    %291 = vmatpush1.msra.mxu0 %v87
    %292 = vmatprep.subr.mxu0 0.0
    %293 = vmatpush1.msra.mxu0 %v88
    %294 = vmatprep.subr.mxu0 0.0
    %295 = vmatpush1.msra.mxu0 %v89
    %296 = vmatprep.subr.mxu0 0.0
    %297 = vmatpush1.msra.mxu0 %v90
    %298 = vmatprep.subr.mxu0 0.0
    %299 = vmatpush1.msra.mxu0 %v91
    %300 = vmatprep.subr.mxu0 0.0
    %301 = vmatpush1.msra.mxu0 %v92
    %302 = vmatprep.subr.mxu0 0.0
    %303 = vmatpush1.msra.mxu0 %v93
    %304 = vmatprep.subr.mxu0 0.0
    %305 = vmatpush1.msra.mxu0 %v94
    %306 = vmatprep.subr.mxu0 0.0
    %307 = vmatpush1.msra.mxu0 %v95
    %308 = vmatprep.subr.mxu0 0.0
    %309 = vmatpush1.msra.mxu0 %v96
    %310 = vmatprep.subr.mxu0 0.0
    %311 = vmatpush1.msra.mxu0 %v97
    %312 = vmatprep.subr.mxu0 0.0
    %313 = vmatpush1.msra.mxu0 %v98
    %314 = vmatprep.subr.mxu0 0.0
    %315 = vmatpush1.msra.mxu0 %v99
    %316 = vmatprep.subr.mxu0 0.0
    %317 = vmatpush1.msra.mxu0 %v100
    %318 = vmatprep.mubr.f32.mxu0 %v177
    %319 = vmatmul.mubr.f32.gmra.mrb[0].mxu0 %v34
    %v320 = vpop.f32.mrb[0].mxu0
    %v321 = vadd.f32 %v251, %v320
    %v322 = vpop.f32.mrb[0].mxu0
    %323 = vdwg.mxu0
    %324 = vmatprep.subr.mxu0 0.0
    %325 = vmatpush1.msra.mxu0 %v101
    %326 = vmatprep.subr.mxu0 0.0
    %327 = vmatpush1.msra.mxu0 %v102
    %328 = vmatprep.subr.mxu0 0.0
    %329 = vmatpush1.msra.mxu0 %v103
    %330 = vmatprep.subr.mxu0 0.0
    %331 = vmatpush1.msra.mxu0 %v104
    %332 = vmatprep.subr.mxu0 0.0
    %333 = vmatpush1.msra.mxu0 %v105
    %334 = vmatprep.subr.mxu0 0.0
    %335 = vmatpush1.msra.mxu0 %v106
    %336 = vmatprep.subr.mxu0 0.0
    %337 = vmatpush1.msra.mxu0 %v107
    %338 = vmatprep.subr.mxu0 0.0
    %339 = vmatpush1.msra.mxu0 %v108
    %340 = vmatprep.subr.mxu0 0.0
    %341 = vmatpush1.msra.mxu0 %v109
    %342 = vmatprep.subr.mxu0 0.0
    %343 = vmatpush1.msra.mxu0 %v110
    %344 = vmatprep.subr.mxu0 0.0
    %345 = vmatpush1.msra.mxu0 %v111
    %346 = vmatprep.subr.mxu0 0.0
    %347 = vmatpush1.msra.mxu0 %v112
    %348 = vmatprep.subr.mxu0 0.0
    %349 = vmatpush1.msra.mxu0 %v113
    %350 = vmatprep.subr.mxu0 0.0
    %351 = vmatpush1.msra.mxu0 %v114
    %352 = vmatprep.subr.mxu0 0.0
    %353 = vmatpush1.msra.mxu0 %v115
    %354 = vmatprep.subr.mxu0 0.0
    %355 = vmatpush1.msra.mxu0 %v116
    %356 = vmatprep.subr.mxu0 0.0
    %357 = vmatpush1.msra.mxu0 %v117
    %358 = vmatprep.subr.mxu0 0.0
    %359 = vmatpush1.msra.mxu0 %v118
    %360 = vmatprep.subr.mxu0 0.0
    %361 = vmatpush1.msra.mxu0 %v119
    %362 = vmatprep.subr.mxu0 0.0
    %363 = vmatpush1.msra.mxu0 %v120
    %364 = vmatprep.subr.mxu0 0.0
    %365 = vmatpush1.msra.mxu0 %v121
    %366 = vmatprep.subr.mxu0 0.0
    %367 = vmatpush1.msra.mxu0 %v122
    %368 = vmatprep.subr.mxu0 0.0
    %369 = vmatpush1.msra.mxu0 %v123
    %370 = vmatprep.subr.mxu0 0.0
    %371 = vmatpush1.msra.mxu0 %v124
    %372 = vmatprep.subr.mxu0 0.0
    %373 = vmatpush1.msra.mxu0 %v125
    %374 = vmatprep.subr.mxu0 0.0
    %375 = vmatpush1.msra.mxu0 %v126
    %376 = vmatprep.subr.mxu0 0.0
    %377 = vmatpush1.msra.mxu0 %v127
    %378 = vmatprep.subr.mxu0 0.0
    %379 = vmatpush1.msra.mxu0 %v128
    %380 = vmatprep.subr.mxu0 0.0
    %381 = vmatpush1.msra.mxu0 %v129
    %382 = vmatprep.subr.mxu0 0.0
    %383 = vmatpush1.msra.mxu0 %v130
    %384 = vmatprep.subr.mxu0 0.0
    %385 = vmatpush1.msra.mxu0 %v131
    %386 = vmatprep.subr.mxu0 0.0
    %387 = vmatpush1.msra.mxu0 %v132
    %388 = vmatprep.mubr.f32.mxu0 %v178
    %389 = vmatmul.mubr.f32.gmra.mrb[0].mxu0 %v35
    %v390 = vpop.f32.mrb[0].mxu0
    %v391 = vadd.f32 %v321, %v390
    %v392 = vpop.f32.mrb[0].mxu0
    %393 = vdwg.mxu0
    %394 = vmatprep.subr.mxu0 0.0
    %395 = vmatpush1.msra.mxu0 %v133
    %396 = vmatprep.subr.mxu0 0.0
    %397 = vmatpush1.msra.mxu0 %v134
    %398 = vmatprep.subr.mxu0 0.0
    %399 = vmatpush1.msra.mxu0 %v135
    %400 = vmatprep.subr.mxu0 0.0
    %401 = vmatpush1.msra.mxu0 %v136
    %402 = vmatprep.subr.mxu0 0.0
    %403 = vmatpush1.msra.mxu0 %v137
    %404 = vmatprep.subr.mxu0 0.0
    %405 = vmatpush1.msra.mxu0 %v138
    %406 = vmatprep.subr.mxu0 0.0
    %407 = vmatpush1.msra.mxu0 %v139
    %408 = vmatprep.subr.mxu0 0.0
    %409 = vmatpush1.msra.mxu0 %v140
    %410 = vmatprep.subr.mxu0 0.0
    %411 = vmatpush1.msra.mxu0 %v141
    %412 = vmatprep.subr.mxu0 0.0
    %413 = vmatpush1.msra.mxu0 %v142
    %414 = vmatprep.subr.mxu0 0.0
    %415 = vmatpush1.msra.mxu0 %v143
    %416 = vmatprep.subr.mxu0 0.0
    %417 = vmatpush1.msra.mxu0 %v144
    %418 = vmatprep.subr.mxu0 0.0
    %419 = vmatpush1.msra.mxu0 %v145
    %420 = vmatprep.subr.mxu0 0.0
    %421 = vmatpush1.msra.mxu0 %v146
    %422 = vmatprep.subr.mxu0 0.0
    %423 = vmatpush1.msra.mxu0 %v147
    %424 = vmatprep.subr.mxu0 0.0
    %425 = vmatpush1.msra.mxu0 %v148
    %426 = vmatprep.subr.mxu0 0.0
    %427 = vmatpush1.msra.mxu0 %v149
    %428 = vmatprep.subr.mxu0 0.0
    %429 = vmatpush1.msra.mxu0 %v150
    %430 = vmatprep.subr.mxu0 0.0
    %431 = vmatpush1.msra.mxu0 %v151
    %432 = vmatprep.subr.mxu0 0.0
    %433 = vmatpush1.msra.mxu0 %v152
    %434 = vmatprep.subr.mxu0 0.0
    %435 = vmatpush1.msra.mxu0 %v153
    %436 = vmatprep.subr.mxu0 0.0
    %437 = vmatpush1.msra.mxu0 %v154
    %438 = vmatprep.subr.mxu0 0.0
    %439 = vmatpush1.msra.mxu0 %v155
    %440 = vmatprep.subr.mxu0 0.0
    %441 = vmatpush1.msra.mxu0 %v156
    %442 = vmatprep.subr.mxu0 0.0
    %443 = vmatpush1.msra.mxu0 %v157
    %444 = vmatprep.subr.mxu0 0.0
    %445 = vmatpush1.msra.mxu0 %v158
    %446 = vmatprep.subr.mxu0 0.0
    %447 = vmatpush1.msra.mxu0 %v159
    %448 = vmatprep.subr.mxu0 0.0
    %449 = vmatpush1.msra.mxu0 %v160
    %450 = vmatprep.subr.mxu0 0.0
    %451 = vmatpush1.msra.mxu0 %v161
    %452 = vmatprep.subr.mxu0 0.0
    %453 = vmatpush1.msra.mxu0 %v162
    %454 = vmatprep.subr.mxu0 0.0
    %455 = vmatpush1.msra.mxu0 %v163
    %456 = vmatprep.subr.mxu0 0.0
    %457 = vmatpush1.msra.mxu0 %v164
    %458 = vmatprep.mubr.f32.mxu0 %v179
    %459 = vmatmul.mubr.f32.gmra.mrb[0].mxu0 %v36
    %v460 = vpop.f32.mrb[0].mxu0
    %v461 = vadd.f32 %v391, %v460
    %v462 = vpop.f32.mrb[0].mxu0
    %463 = vdwg.mxu0
    %v464 = vmax.f32 %v461, 0.0
    %v465 = vld [vmem:[%s3] sm:$0xff]
    %v466 = vld [vmem:[%s3 + $0x8] sm:$0xff]
    %v467 = vld [vmem:[%s3 + $0x10] sm:$0xff]
    %v468 = vld [vmem:[%s3 + $0x18] sm:$0xff]
    %v469 = vld [vmem:[%s3 + $0x20] sm:$0xff]
    %v470 = vld [vmem:[%s3 + $0x28] sm:$0xff]
    %v471 = vld [vmem:[%s3 + $0x30] sm:$0xff]
    %v472 = vld [vmem:[%s3 + $0x38] sm:$0xff]
    %v473 = vld [vmem:[%s3 + $0x40] sm:$0xff]
    %v474 = vld [vmem:[%s3 + $0x48] sm:$0xff]
    %v475 = vld [vmem:[%s3 + $0x50] sm:$0xff]
    %v476 = vld [vmem:[%s3 + $0x58] sm:$0xff]
    %v477 = vld [vmem:[%s3 + $0x60] sm:$0xff]
    %v478 = vld [vmem:[%s3 + $0x68] sm:$0xff]
    %v479 = vld [vmem:[%s3 + $0x70] sm:$0xff]
    %v480 = vld [vmem:[%s3 + $0x78] sm:$0xff]
    %v481 = vld [vmem:[%s4] sm:$0x1]
    %v483 = vlaneseq
    %v484 = vshrl.u32 %v483, 7
    %v485 = vsub.s32 0, %v484
    %v486 = vrot.slane %v481, %v485
    %488 = vmatprep.subr.mxu0 0.0
    %489 = vmatpush1.msra.mxu0 %v465
    %490 = vmatprep.subr.mxu0 0.0
    %491 = vmatpush1.msra.mxu0 %v466
    %492 = vmatprep.subr.mxu0 0.0
    %493 = vmatpush1.msra.mxu0 %v467
    %494 = vmatprep.subr.mxu0 0.0
    %495 = vmatpush1.msra.mxu0 %v468
    %496 = vmatprep.subr.mxu0 0.0
    %497 = vmatpush1.msra.mxu0 %v469
    %498 = vmatprep.subr.mxu0 0.0
    %499 = vmatpush1.msra.mxu0 %v470
    %500 = vmatprep.subr.mxu0 0.0
    %501 = vmatpush1.msra.mxu0 %v471
    %502 = vmatprep.subr.mxu0 0.0
    %503 = vmatpush1.msra.mxu0 %v472
    %504 = vmatprep.subr.mxu0 0.0
    %505 = vmatpush1.msra.mxu0 %v473
    %506 = vmatprep.subr.mxu0 0.0
    %507 = vmatpush1.msra.mxu0 %v474
    %508 = vmatprep.subr.mxu0 0.0
    %509 = vmatpush1.msra.mxu0 %v475
    %510 = vmatprep.subr.mxu0 0.0
    %511 = vmatpush1.msra.mxu0 %v476
    %512 = vmatprep.subr.mxu0 0.0
    %513 = vmatpush1.msra.mxu0 %v477
    %514 = vmatprep.subr.mxu0 0.0
    %515 = vmatpush1.msra.mxu0 %v478
    %516 = vmatprep.subr.mxu0 0.0
    %517 = vmatpush1.msra.mxu0 %v479
    %518 = vmatprep.subr.mxu0 0.0
    %519 = vmatpush1.msra.mxu0 %v480
    %520 = vmatprep.subr.mxu0 0.0
    %521 = vmatpush1.msra.mxu0 0.0
    %522 = vmatprep.subr.mxu0 0.0
    %523 = vmatpush1.msra.mxu0 0.0
    %524 = vmatprep.subr.mxu0 0.0
    %525 = vmatpush1.msra.mxu0 0.0
    %526 = vmatprep.subr.mxu0 0.0
    %527 = vmatpush1.msra.mxu0 0.0
    %528 = vmatprep.subr.mxu0 0.0
    %529 = vmatpush1.msra.mxu0 0.0
    %530 = vmatprep.subr.mxu0 0.0
    %531 = vmatpush1.msra.mxu0 0.0
    %532 = vmatprep.subr.mxu0 0.0
    %533 = vmatpush1.msra.mxu0 0.0
    %534 = vmatprep.subr.mxu0 0.0
    %535 = vmatpush1.msra.mxu0 0.0
    %536 = vmatprep.subr.mxu0 0.0
    %537 = vmatpush1.msra.mxu0 0.0
    %538 = vmatprep.subr.mxu0 0.0
    %539 = vmatpush1.msra.mxu0 0.0
    %540 = vmatprep.subr.mxu0 0.0
    %541 = vmatpush1.msra.mxu0 0.0
    %542 = vmatprep.subr.mxu0 0.0
    %543 = vmatpush1.msra.mxu0 0.0
    %544 = vmatprep.subr.mxu0 0.0
    %545 = vmatpush1.msra.mxu0 0.0
    %546 = vmatprep.subr.mxu0 0.0
    %547 = vmatpush1.msra.mxu0 0.0
    %548 = vmatprep.subr.mxu0 0.0
    %549 = vmatpush1.msra.mxu0 0.0
    %550 = vmatprep.subr.mxu0 0.0
    %551 = vmatpush1.msra.mxu0 0.0
    %552 = vmatprep.mubr.f32.mxu0 0.0
    %553 = vmatmul.mubr.f32.gmra.mrb[0].mxu0 %v464
    %v554 = vpop.f32.mrb[0].mxu0
    %v555 = vadd.f32 %v486, %v554
    %v556 = vpop.f32.mrb[0].mxu0
    %557 = vdwg.mxu0
    %v558 = vlaneseq
    %v559 = vshrl.u32 %v558, 7
    %vm560 = vcmp.lt.s32.totalorder %v559, 2
    %v561 = vsel %vm560, 1, 0
    %v562 = vcvt.s32.f32 %v561
    %v563 = vsub.f32 1.0, %v562
    %v564 = vmul.f32 %v555, %v562
    %vm565 = vcmask 1043456
    %v566 = vsel %vm565, %v564, 0.0
    %v567 = vrot.slane %v566, 4
    %v568 = vadd.f32 %v566, %v567
    %v569 = vrot.slane %v568, 2
    %v570 = vadd.f32 %v568, %v569
    %v571 = vrot.slane %v570, 1
    %v572 = vadd.f32 %v570, %v571
    %v573 = vmul.f32 %v572, 0.5
    %v574 = vmul.f32 %v555, %v563
    %v575 = vsel %vm565, %v574, 0.0
    %v576 = vrot.slane %v575, 4
    %v577 = vadd.f32 %v575, %v576
    %v578 = vrot.slane %v577, 2
    %v579 = vadd.f32 %v577, %v578
    %v580 = vrot.slane %v579, 1
    %v581 = vadd.f32 %v579, %v580
    %v582 = vmul.f32 %v581, 0.5
    %v583 = vmul.f32 %v562, %v573
    %v584 = vmul.f32 %v563, %v582
    %v585 = vadd.f32 %v583, %v584
    %v586 = vsub.f32 %v555, %v585
    %v587 = vmul.f32 %v586, %v586
    %v588 = vmul.f32 %v587, %v562
    %v589 = vsel %vm565, %v588, 0.0
    %v590 = vrot.slane %v589, 4
    %v591 = vadd.f32 %v589, %v590
    %v592 = vrot.slane %v591, 2
    %v593 = vadd.f32 %v591, %v592
    %v594 = vrot.slane %v593, 1
    %v595 = vadd.f32 %v593, %v594
    %v596 = vmul.f32 %v595, 0.5
    %v597 = vmul.f32 %v587, %v563
    %v598 = vsel %vm565, %v597, 0.0
    %v599 = vrot.slane %v598, 4
    %v600 = vadd.f32 %v598, %v599
    %v601 = vrot.slane %v600, 2
    %v602 = vadd.f32 %v600, %v601
    %v603 = vrot.slane %v602, 1
    %v604 = vadd.f32 %v602, %v603
    %v605 = vmul.f32 %v604, 0.5
    %v606 = vmul.f32 %v562, %v596
    %v607 = vmul.f32 %v563, %v605
    %v608 = vadd.f32 %v606, %v607
    %v609 = vadd.f32 %v608, 1e-05
    %v610 = vrsqrt.pop %v609
    %v611 = vmul.f32 %v586, %v610
    %v612 = vld [vmem:[%s5] sm:$0x1]
    %v614 = vlaneseq
    %v615 = vshrl.u32 %v614, 7
    %v616 = vsub.s32 0, %v615
    %v617 = vrot.slane %v612, %v616
    %v619 = vmul.f32 %v611, %v617
    %v620 = vld [vmem:[%s6] sm:$0x1]
    %v622 = vlaneseq
    %v623 = vshrl.u32 %v622, 7
    %v624 = vsub.s32 0, %v623
    %v625 = vrot.slane %v620, %v624
    %v627 = vadd.f32 %v619, %v625
    %v628 = vmax.f32 %v627, 0.0
    %v629 = vld [vmem:[%s7] sm:$0xff]
    %v630 = vld [vmem:[%s7 + $0x8] sm:$0xff]
    %v631 = vld [vmem:[%s7 + $0x10] sm:$0xff]
    %v632 = vld [vmem:[%s7 + $0x18] sm:$0xff]
    %v633 = vld [vmem:[%s7 + $0x20] sm:$0xff]
    %v634 = vld [vmem:[%s7 + $0x28] sm:$0xff]
    %v635 = vld [vmem:[%s7 + $0x30] sm:$0xff]
    %v636 = vld [vmem:[%s7 + $0x38] sm:$0xff]
    %v637 = vld [vmem:[%s7 + $0x40] sm:$0xff]
    %v638 = vld [vmem:[%s7 + $0x48] sm:$0xff]
    %v639 = vld [vmem:[%s7 + $0x50] sm:$0xff]
    %v640 = vld [vmem:[%s7 + $0x58] sm:$0xff]
    %v641 = vld [vmem:[%s7 + $0x60] sm:$0xff]
    %v642 = vld [vmem:[%s7 + $0x68] sm:$0xff]
    %v643 = vld [vmem:[%s7 + $0x70] sm:$0xff]
    %v644 = vld [vmem:[%s7 + $0x78] sm:$0xff]
    %v645 = vld [vmem:[%s8] sm:$0x1]
    %v647 = vlaneseq
    %v648 = vshrl.u32 %v647, 7
    %v649 = vsub.s32 0, %v648
    %v650 = vrot.slane %v645, %v649
    %652 = vmatprep.subr.mxu0 0.0
    %653 = vmatpush1.msra.mxu0 %v629
    %654 = vmatprep.subr.mxu0 0.0
    %655 = vmatpush1.msra.mxu0 %v630
    %656 = vmatprep.subr.mxu0 0.0
    %657 = vmatpush1.msra.mxu0 %v631
    %658 = vmatprep.subr.mxu0 0.0
    %659 = vmatpush1.msra.mxu0 %v632
    %660 = vmatprep.subr.mxu0 0.0
    %661 = vmatpush1.msra.mxu0 %v633
    %662 = vmatprep.subr.mxu0 0.0
    %663 = vmatpush1.msra.mxu0 %v634
    %664 = vmatprep.subr.mxu0 0.0
    %665 = vmatpush1.msra.mxu0 %v635
    %666 = vmatprep.subr.mxu0 0.0
    %667 = vmatpush1.msra.mxu0 %v636
    %668 = vmatprep.subr.mxu0 0.0
    %669 = vmatpush1.msra.mxu0 %v637
    %670 = vmatprep.subr.mxu0 0.0
    %671 = vmatpush1.msra.mxu0 %v638
    %672 = vmatprep.subr.mxu0 0.0
    %673 = vmatpush1.msra.mxu0 %v639
    %674 = vmatprep.subr.mxu0 0.0
    %675 = vmatpush1.msra.mxu0 %v640
    %676 = vmatprep.subr.mxu0 0.0
    %677 = vmatpush1.msra.mxu0 %v641
    %678 = vmatprep.subr.mxu0 0.0
    %679 = vmatpush1.msra.mxu0 %v642
    %680 = vmatprep.subr.mxu0 0.0
    %681 = vmatpush1.msra.mxu0 %v643
    %682 = vmatprep.subr.mxu0 0.0
    %683 = vmatpush1.msra.mxu0 %v644
    %684 = vmatprep.subr.mxu0 0.0
    %685 = vmatpush1.msra.mxu0 0.0
    %686 = vmatprep.subr.mxu0 0.0
    %687 = vmatpush1.msra.mxu0 0.0
    %688 = vmatprep.subr.mxu0 0.0
    %689 = vmatpush1.msra.mxu0 0.0
    %690 = vmatprep.subr.mxu0 0.0
    %691 = vmatpush1.msra.mxu0 0.0
    %692 = vmatprep.subr.mxu0 0.0
    %693 = vmatpush1.msra.mxu0 0.0
    %694 = vmatprep.subr.mxu0 0.0
    %695 = vmatpush1.msra.mxu0 0.0
    %696 = vmatprep.subr.mxu0 0.0
    %697 = vmatpush1.msra.mxu0 0.0
    %698 = vmatprep.subr.mxu0 0.0
    %699 = vmatpush1.msra.mxu0 0.0
    %700 = vmatprep.subr.mxu0 0.0
    %701 = vmatpush1.msra.mxu0 0.0
    %702 = vmatprep.subr.mxu0 0.0
    %703 = vmatpush1.msra.mxu0 0.0
    %704 = vmatprep.subr.mxu0 0.0
    %705 = vmatpush1.msra.mxu0 0.0
    %706 = vmatprep.subr.mxu0 0.0
    %707 = vmatpush1.msra.mxu0 0.0
    %708 = vmatprep.subr.mxu0 0.0
    %709 = vmatpush1.msra.mxu0 0.0
    %710 = vmatprep.subr.mxu0 0.0
    %711 = vmatpush1.msra.mxu0 0.0
    %712 = vmatprep.subr.mxu0 0.0
    %713 = vmatpush1.msra.mxu0 0.0
    %714 = vmatprep.subr.mxu0 0.0
    %715 = vmatpush1.msra.mxu0 0.0
    %716 = vmatprep.mubr.f32.mxu0 0.0
    %717 = vmatmul.mubr.f32.gmra.mrb[0].mxu0 %v628
    %v718 = vpop.f32.mrb[0].mxu0
    %v719 = vadd.f32 %v650, %v718
    %v720 = vpop.f32.mrb[0].mxu0
    %721 = vdwg.mxu0
    %v722 = vmul.f32 %v719, %v719
    %v723 = vsel %vm565, %v722, 0.0
    %724 = vadd.xlane.f32.xlu0 %v723
    %v725 = vpop.xlane.xlu0 %724
    %v726 = vmax.f32 %v725, 1e-16
    %v727 = vrsqrt.pop %v726
    %v728 = vmul.f32 %v719, %v727
    %729 = vmatprep.subr.mxu0 0.0
    %730 = vmatpush1.xpose.msra.mxu0 %v728
    %731 = vmatprep.subr.mxu0 0.0
    %732 = vmatpush1.xpose.msra.mxu0 0.0
    %733 = vmatprep.subr.mxu0 0.0
    %734 = vmatpush1.xpose.msra.mxu0 0.0
    %735 = vmatprep.subr.mxu0 0.0
    %736 = vmatpush1.xpose.msra.mxu0 0.0
    %737 = vmatprep.subr.mxu0 0.0
    %738 = vmatpush1.xpose.msra.mxu0 0.0
    %739 = vmatprep.subr.mxu0 0.0
    %740 = vmatpush1.xpose.msra.mxu0 0.0
    %741 = vmatprep.subr.mxu0 0.0
    %742 = vmatpush1.xpose.msra.mxu0 0.0
    %743 = vmatprep.subr.mxu0 0.0
    %744 = vmatpush1.xpose.msra.mxu0 0.0
    %745 = vmatprep.subr.mxu0 0.0
    %746 = vmatpush1.xpose.msra.mxu0 0.0
    %747 = vmatprep.subr.mxu0 0.0
    %748 = vmatpush1.xpose.msra.mxu0 0.0
    %749 = vmatprep.subr.mxu0 0.0
    %750 = vmatpush1.xpose.msra.mxu0 0.0
    %751 = vmatprep.subr.mxu0 0.0
    %752 = vmatpush1.xpose.msra.mxu0 0.0
    %753 = vmatprep.subr.mxu0 0.0
    %754 = vmatpush1.xpose.msra.mxu0 0.0
    %755 = vmatprep.subr.mxu0 0.0
    %756 = vmatpush1.xpose.msra.mxu0 0.0
    %757 = vmatprep.subr.mxu0 0.0
    %758 = vmatpush1.xpose.msra.mxu0 0.0
    %759 = vmatprep.subr.mxu0 0.0
    %760 = vmatpush1.xpose.msra.mxu0 0.0
    %761 = vmatprep.subr.mxu0 0.0
    %762 = vmatpush1.xpose.msra.mxu0 0.0
    %763 = vmatprep.subr.mxu0 0.0
    %764 = vmatpush1.xpose.msra.mxu0 0.0
    %765 = vmatprep.subr.mxu0 0.0
    %766 = vmatpush1.xpose.msra.mxu0 0.0
    %767 = vmatprep.subr.mxu0 0.0
    %768 = vmatpush1.xpose.msra.mxu0 0.0
    %769 = vmatprep.subr.mxu0 0.0
    %770 = vmatpush1.xpose.msra.mxu0 0.0
    %771 = vmatprep.subr.mxu0 0.0
    %772 = vmatpush1.xpose.msra.mxu0 0.0
    %773 = vmatprep.subr.mxu0 0.0
    %774 = vmatpush1.xpose.msra.mxu0 0.0
    %775 = vmatprep.subr.mxu0 0.0
    %776 = vmatpush1.xpose.msra.mxu0 0.0
    %777 = vmatprep.subr.mxu0 0.0
    %778 = vmatpush1.xpose.msra.mxu0 0.0
    %779 = vmatprep.subr.mxu0 0.0
    %780 = vmatpush1.xpose.msra.mxu0 0.0
    %781 = vmatprep.subr.mxu0 0.0
    %782 = vmatpush1.xpose.msra.mxu0 0.0
    %783 = vmatprep.subr.mxu0 0.0
    %784 = vmatpush1.xpose.msra.mxu0 0.0
    %785 = vmatprep.subr.mxu0 0.0
    %786 = vmatpush1.xpose.msra.mxu0 0.0
    %787 = vmatprep.subr.mxu0 0.0
    %788 = vmatpush1.xpose.msra.mxu0 0.0
    %789 = vmatprep.subr.mxu0 0.0
    %790 = vmatpush1.xpose.msra.mxu0 0.0
    %791 = vmatprep.subr.mxu0 0.0
    %792 = vmatpush1.xpose.msra.mxu0 0.0
    %793 = vmatprep.mubr.f32.mxu0 0.0
    %794 = vmatmul.mubr.f32.gmra.mrb[0].mxu0 %v728
    %v795 = vpop.f32.mrb[0].mxu0
    %v796 = vadd.f32 0.0, %v795
    %v797 = vpop.f32.mrb[0].mxu0
    %798 = vdwg.mxu0
    %v799 = vmul.f32 %v796, 2.0
    %v800 = vlaneseq
    %v801 = vand.u32 %v800, 127
    %vm802 = vcmp.ne.s32.totalorder %v559, %v801
    %v803 = vsub.s32 %v801, %v559
    %vm804 = vcmp.eq.s32.totalorder %v803, 2
    %v805 = vsub.s32 %v559, %v801
    %vm806 = vcmp.eq.s32.totalorder %v805, 2
    %vm807 = vmor %vm804, %vm806
    %v808 = vsel %vm807, %v799, 0.0
    %vm809 = vcmask 27648
    %v810 = vsel %vm809, %v808, 0.0
    %811 = vadd.xlane.f32.xlu0 %v810
    %v812 = vpop.xlane.xlu0 %811
    %v813 = vsel %vm802, %v799, -1e+30
    %v814 = vsel %vm809, %v813, -inf
    %815 = vmax.xlane.f32.xlu0 %v814
    %v816 = vpop.xlane.xlu0 %815
    %v817 = vsub.f32 %v813, %v816
    %v818 = vmul.f32 %v817, 1.442695
    %v819 = vpow.pop %v818
    %v820 = vsel %vm809, %v819, 0.0
    %821 = vadd.xlane.f32.xlu0 %v820
    %v822 = vpop.xlane.xlu0 %821
    %v823 = vlog2.pop %v822
    %v824 = vmul.f32 %v823, 0.6931472
    %v825 = vadd.f32 %v816, %v824
    %v826 = vsub.f32 %v825, %v812
    %v827 = vsel %vm565, %v826, 0.0
    %v828 = vrot.slane %v827, 4
    %v829 = vadd.f32 %v827, %v828
    %v830 = vrot.slane %v829, 2
    %v831 = vadd.f32 %v829, %v830
    %v832 = vrot.slane %v831, 1
    %v833 = vadd.f32 %v831, %v832
    %v834 = vmul.f32 %v833, 0.25
    %vm835 = vcmask 0
    %836 = vst.msk [vmem:[#allocation2] sm:$0x1] %vm835, %v834
    // Predicated region
    $region38: #{simclr_forward.1} parent=1 // pred_check
      _
    $region39: #{simclr_forward.1} parent=1 // pred_check_branch
      %838 = sbr.rel (0) target = $region41
    $region40: #{simclr_forward.1} parent=1 // pred_region
      %s840 = ssub.s32 16, 16
      %841 = vsyncadd [#allocation3], %s840
      %s843 = sshll.u32 [#allocation2], 4
      %s844 = int_to_ptr.vmem [resolvable:$true] %s843
      %846 = dma.vmem_to_hbm [thread:$0]  %s844, 16, %s9, [#allocation3]
    $region41: #{simclr_forward.1} parent=1 // pred_fallthru
      _
    // Predicated region
    $region42: #{simclr_forward.1} parent=1 // pred_check
      _
    $region43: #{simclr_forward.1} parent=1 // pred_check_branch
      %848 = sbr.rel (0) target = $region45
    $region44: #{simclr_forward.1} parent=1 // pred_region
      %849 = dma.done [#allocation3], 16
    $region45: #{simclr_forward.1} parent=1 // pred_fallthru
      _
    %850 = vsyncpa [#allocation3], 1

</llo_original>
